<compile_context>
chip_gen: v5e
topology: v5e:2x2
jax: 0.10.0
libtpu: 0.0.40
codegen_flags: <defaults>
</compile_context>

<pallas_src>
import math
from functools import reduce

import jax
import jax.numpy as jnp
from jax import lax
from jax.experimental import pallas as pl
from jax.experimental.pallas import tpu as pltpu

# ----------------------------- configuration --------------------------------
B, S, H, F_DIM, V = 2, 16, 32, 64, 64          # batch, seq, hidden, ffn, vocab
N = B * S                                      # flattened token rows
HP, FP, VP = 128, 128, 128                     # lane-padded hidden / ffn / vocab
PAD_ID, MASK_ID = 0, 2
MASK_PROB, REPLACE_PROB = 0.15, 0.9
MASK_IGNORE_IDS = (PAD_ID,)                    # mask_ignore_token_ids ∪ {pad}
EPS = 1e-5
ATTN_SCALE = 1.0 / math.sqrt(H)


# ----------------------------- masking glue (plain JAX) ---------------------
def mask_with_tokens(t, token_ids):
    init_no_mask = jnp.zeros_like(t, dtype=bool)
    return reduce(lambda acc, el: acc | (t == el), token_ids, init_no_mask)


def prob_mask_like(t, prob, key):
    return jax.random.uniform(key, t.shape) < prob


def get_mask_subset_with_prob(mask, prob, key):
    # TODO(synk): topk + scatter based subset sampling is data-dependent RNG glue;
    # kept in plain JAX (no clean Pallas equivalent).
    batch, seq_len = mask.shape
    max_masked = math.ceil(prob * seq_len)
    num_tokens = jnp.sum(mask, axis=-1, keepdims=True)
    mask_excess = jnp.cumsum(mask.astype(jnp.int32), axis=-1) > jnp.ceil(num_tokens * prob)
    mask_excess = mask_excess[:, :max_masked]
    rand = jnp.where(mask, jax.random.uniform(key, (batch, seq_len)), -1e9)
    _, sampled_indices = jax.lax.top_k(rand, max_masked)
    sampled_indices = jnp.where(mask_excess, 0, sampled_indices + 1)
    new_mask = jnp.zeros((batch, seq_len + 1), dtype=jnp.int32)
    new_mask = new_mask.at[jnp.arange(batch)[:, None], sampled_indices].set(1)
    return new_mask[:, 1:].astype(bool)


# ----------------------------- fused Pallas kernel ---------------------------
def _layernorm_padded(x, g, b):
    # x has only the first H lanes populated (rest are exact zeros); divide by the
    # real H and use E[x^2]-mu^2 so zero padding does not bias the statistics.
    mu = jnp.sum(x, axis=-1, keepdims=True) * (1.0 / H)
    ex2 = jnp.sum(x * x, axis=-1, keepdims=True) * (1.0 / H)
    var = ex2 - mu * mu
    # padded lanes: (0 - mu) * rsqrt * g(=0) + b(=0) == 0, so padding stays zero.
    return (x - mu) * lax.rsqrt(var + EPS) * g + b


def fused_bert_kernel(x_ref, labels_ref,
                      wqkv_ref, wo_ref, w1_ref, w2_ref, wlm_ref,
                      small_ref, loss_ref):
    x = x_ref[...]                                            # (N, HP) f32
    sm = small_ref[...]                                       # (8, 128) f32 packed params
    ln1_g, ln1_b = sm[0:1, :], sm[1:2, :]
    b1,    b2    = sm[2:3, :], sm[3:4, :]
    ln2_g, ln2_b = sm[4:5, :], sm[5:6, :]
    b_lm         = sm[6:7, :]                                 # padded vocab lanes = -1e30

    xb = x.astype(jnp.bfloat16)

    # --- self-attention (fused QKV; ATTN_SCALE pre-folded into Q weight) ---
    qkv = jnp.dot(xb, wqkv_ref[...],
                  preferred_element_type=jnp.float32)          # (N, 3*HP) f32
    qkv = qkv.astype(jnp.bfloat16)                             # single cast of whole slab
    q = qkv[:, 0 * HP:1 * HP]                                  # 128-lane-aligned views
    k = qkv[:, 1 * HP:2 * HP]
    v = qkv[:, 2 * HP:3 * HP]

    # batched per-example attention: no cross-batch score work, no score mask
    qb = q.reshape(B, S, HP)
    kb = k.reshape(B, S, HP)
    vb = v.reshape(B, S, HP)
    s = jnp.einsum('bqd,bkd->bqk', qb, kb,
                   preferred_element_type=jnp.float32)         # (B, S, S)
    s = s - jnp.max(s, axis=-1, keepdims=True)
    p = jnp.exp(s)
    p = p * pl.reciprocal(jnp.sum(p, axis=-1, keepdims=True), approx=True)
    attn = jnp.einsum('bqk,bkd->bqd', p.astype(jnp.bfloat16), vb,
                      preferred_element_type=jnp.float32)      # (B, S, HP)
    attn2 = attn.reshape(N, HP)

    out = jnp.dot(attn2.astype(jnp.bfloat16), wo_ref[...],
                  preferred_element_type=jnp.float32)          # (N, HP)
    h1 = _layernorm_padded(x + out, ln1_g, ln1_b)              # (N, HP) f32

    # --- feed-forward ---
    hf = jnp.dot(h1.astype(jnp.bfloat16), w1_ref[...],
                 preferred_element_type=jnp.float32) + b1      # (N, FP)
    hf = jnp.maximum(hf, 0.0)
    y = jnp.dot(hf.astype(jnp.bfloat16), w2_ref[...],
                preferred_element_type=jnp.float32) + b2       # (N, HP)
    h2 = _layernorm_padded(h1 + y, ln2_g, ln2_b)               # (N, HP) f32

    # --- LM head (logits stay in VMEM); padded vocab lanes get -1e30 via b_lm ---
    logits = jnp.dot(h2.astype(jnp.bfloat16), wlm_ref[...],
                     preferred_element_type=jnp.float32) + b_lm  # (N, VP)

    # --- masked cross-entropy (ignore_index = PAD_ID) ---
    labels = labels_ref[...]                                   # (N, 1) i32
    m = jnp.max(logits, axis=-1, keepdims=True)
    lse = jnp.log(jnp.sum(jnp.exp(logits - m), axis=-1, keepdims=True)) + m
    vocab_ids = lax.broadcasted_iota(jnp.int32, logits.shape, 1)
    onehot = (vocab_ids == labels).astype(jnp.float32)
    lab_logit = jnp.sum(logits * onehot, axis=-1, keepdims=True)
    nll = lse - lab_logit                                      # (N, 1)
    valid = (labels != PAD_ID).astype(jnp.float32)
    loss_sum = jnp.sum(nll * valid)
    cnt = jnp.sum(valid)
    # guard cnt==0 -> loss 0 instead of NaN (cannot occur with tokens sampled in [3, V))
    loss_ref[0, 0] = loss_sum / jnp.maximum(cnt, 1.0)


def bert_forward_fused(x2d, labels2d, wqkv, wo, w1, w2, wlm, small):
    vmem = pl.BlockSpec(memory_space=pltpu.MemorySpace.VMEM)
    smem = pl.BlockSpec(memory_space=pltpu.MemorySpace.SMEM)
    return pl.pallas_call(
        fused_bert_kernel,
        out_shape=jax.ShapeDtypeStruct((1, 1), jnp.float32),
        in_specs=[vmem] * 8,
        out_specs=smem,
    )(x2d, labels2d, wqkv, wo, w1, w2, wlm, small)


# ----------------------------- model ------------------------------------------
def init_params(key):
    ks = jax.random.split(key, 9)

    def dense(k, fan_in, fan_out):
        return (jax.random.normal(k, (fan_in, fan_out), jnp.float32)
                * (1.0 / math.sqrt(fan_in)))

    return dict(
        emb=jax.random.normal(ks[0], (V, H), jnp.float32) * 0.02,
        pos=jax.random.normal(ks[1], (S, H), jnp.float32) * 0.02,
        wq=dense(ks[2], H, H), wk=dense(ks[3], H, H), wv=dense(ks[4], H, H),
        wo=dense(ks[5], H, H),
        ln1_g=jnp.ones((1, H), jnp.float32), ln1_b=jnp.zeros((1, H), jnp.float32),
        w1=dense(ks[6], H, F_DIM), b1=jnp.zeros((1, F_DIM), jnp.float32),
        w2=dense(ks[7], F_DIM, H), b2=jnp.zeros((1, H), jnp.float32),
        ln2_g=jnp.ones((1, H), jnp.float32), ln2_b=jnp.zeros((1, H), jnp.float32),
        w_lm=dense(ks[8], H, V), b_lm=jnp.zeros((1, V), jnp.float32),
    )


def _pad2(a, rows, cols):
    out = jnp.zeros((rows, cols), a.dtype)
    return out.at[:a.shape[0], :a.shape[1]].set(a)


def transformer_loss(masked_seq, labels, p):
    # embedding gather + positional add stay in plain JAX glue
    x = p["emb"][masked_seq] + p["pos"][None, :, :]            # (B, S, H)
    x2d = _pad2(x.reshape(N, H), N, HP).astype(jnp.float32)    # lane-padded [N, 128]
    labels2d = labels.reshape(N, 1).astype(jnp.int32)

    # lane-padded bf16 weights; ATTN_SCALE folded into the Q columns (one-time)
    wqkv = jnp.concatenate([
        _pad2(p["wq"] * ATTN_SCALE, HP, HP),
        _pad2(p["wk"], HP, HP),
        _pad2(p["wv"], HP, HP)], axis=1).astype(jnp.bfloat16)  # (HP, 3*HP)
    wo = _pad2(p["wo"], HP, HP).astype(jnp.bfloat16)
    w1 = _pad2(p["w1"], HP, FP).astype(jnp.bfloat16)
    w2 = _pad2(p["w2"], FP, HP).astype(jnp.bfloat16)
    wlm = _pad2(p["w_lm"], HP, VP).astype(jnp.bfloat16)

    # one packed (8,128) slab for all tiny per-channel params (single DMA);
    # padded vocab lanes of the LM bias carry -1e30 so they vanish from the softmax.
    b_lm_row = jnp.full((1, VP), -1e30, jnp.float32).at[:, :V].set(p["b_lm"])
    small = jnp.concatenate([
        _pad2(p["ln1_g"], 1, 128), _pad2(p["ln1_b"], 1, 128),
        _pad2(p["b1"], 1, 128),    _pad2(p["b2"], 1, 128),
        _pad2(p["ln2_g"], 1, 128), _pad2(p["ln2_b"], 1, 128),
        b_lm_row, jnp.zeros((1, 128), jnp.float32)], axis=0)   # (8, 128)

    return bert_forward_fused(x2d, labels2d, wqkv, wo, w1, w2, wlm, small)[0, 0]


def bert_mlm_forward(seq, params, key):
    k_mask, k_replace = jax.random.split(key)
    no_mask = mask_with_tokens(seq, MASK_IGNORE_IDS)
    mask = get_mask_subset_with_prob(~no_mask, MASK_PROB, k_mask)
    masked_seq = seq
    labels = jnp.where(mask, seq, PAD_ID)
    # random_token_prob == 0.0 in the reference default -> that branch is skipped.
    replace = prob_mask_like(seq, REPLACE_PROB, k_replace)
    masked_seq = jnp.where(mask & replace, MASK_ID, masked_seq)
    return transformer_loss(masked_seq, labels, params)


# ----------------------------- main ------------------------------------------
if __name__ == "__main__":
    root = jax.random.PRNGKey(0)
    k_seq, k_params, k_fwd = jax.random.split(root, 3)

    # token ids in [3, V): avoids pad(0)/mask(2) so maskable positions exist
    seq = jax.random.randint(k_seq, (B, S), 3, V, dtype=jnp.int32)
    params = init_params(k_params)

    loss = jax.jit(bert_mlm_forward)(seq, params, k_fwd)
    loss = jax.block_until_ready(loss)
    assert loss.shape == () and jnp.isfinite(loss)
    print("KERNEL_OK")
</pallas_src>

<mosaic_0001>
module attributes {stable_mosaic.version = 11 : i64} {
  func.func @fused_bert_kernel(%arg0: memref<32x128xf32, #tpu.memory_space<vmem>>, %arg1: memref<32x1xi32, #tpu.memory_space<vmem>>, %arg2: memref<128x384xbf16, #tpu.memory_space<vmem>>, %arg3: memref<128x128xbf16, #tpu.memory_space<vmem>>, %arg4: memref<128x128xbf16, #tpu.memory_space<vmem>>, %arg5: memref<128x128xbf16, #tpu.memory_space<vmem>>, %arg6: memref<128x128xbf16, #tpu.memory_space<vmem>>, %arg7: memref<8x128xf32, #tpu.memory_space<vmem>>, %arg8: memref<1x1xf32, #tpu.memory_space<smem>>) attributes {dimension_semantics = [], scalar_prefetch = 0 : i64, scratch_operands = 0 : i64, tpu.core_type = #tpu.core_type<tc>} {
    %c0 = arith.constant 0 : index
    %c0_0 = arith.constant 0 : index
    %0 = vector.load %arg0[%c0, %c0_0] : memref<32x128xf32, #tpu.memory_space<vmem>>, vector<32x128xf32>
    %c0_1 = arith.constant 0 : index
    %c0_2 = arith.constant 0 : index
    %1 = vector.load %arg7[%c0_1, %c0_2] : memref<8x128xf32, #tpu.memory_space<vmem>>, vector<8x128xf32>
    %2 = vector.extract_strided_slice %1 {offsets = [0, 0], sizes = [1, 128], strides = [1, 1]} : vector<8x128xf32> to vector<1x128xf32>
    %3 = vector.extract_strided_slice %1 {offsets = [1, 0], sizes = [1, 128], strides = [1, 1]} : vector<8x128xf32> to vector<1x128xf32>
    %4 = vector.extract_strided_slice %1 {offsets = [2, 0], sizes = [1, 128], strides = [1, 1]} : vector<8x128xf32> to vector<1x128xf32>
    %5 = vector.extract_strided_slice %1 {offsets = [3, 0], sizes = [1, 128], strides = [1, 1]} : vector<8x128xf32> to vector<1x128xf32>
    %6 = vector.extract_strided_slice %1 {offsets = [4, 0], sizes = [1, 128], strides = [1, 1]} : vector<8x128xf32> to vector<1x128xf32>
    %7 = vector.extract_strided_slice %1 {offsets = [5, 0], sizes = [1, 128], strides = [1, 1]} : vector<8x128xf32> to vector<1x128xf32>
    %8 = vector.extract_strided_slice %1 {offsets = [6, 0], sizes = [1, 128], strides = [1, 1]} : vector<8x128xf32> to vector<1x128xf32>
    %9 = arith.truncf %0 : vector<32x128xf32> to vector<32x128xbf16>
    %c0_3 = arith.constant 0 : index
    %c0_4 = arith.constant 0 : index
    %10 = vector.load %arg2[%c0_3, %c0_4] : memref<128x384xbf16, #tpu.memory_space<vmem>>, vector<128x384xbf16>
    %cst = arith.constant dense<0.000000e+00> : vector<32x384xf32>
    %11 = tpu.matmul %9, %10, %cst {dimension_numbers = #tpu.dot_dimension_numbers<[1], [0], [0], [1], [0, 0, 1, 1], [], []>} : vector<32x128xbf16>, vector<128x384xbf16>, vector<32x384xf32> -> vector<32x384xf32>
    %12 = arith.truncf %11 : vector<32x384xf32> to vector<32x384xbf16>
    %13 = vector.extract_strided_slice %12 {offsets = [0, 0], sizes = [32, 128], strides = [1, 1]} : vector<32x384xbf16> to vector<32x128xbf16>
    %14 = vector.extract_strided_slice %12 {offsets = [0, 128], sizes = [32, 128], strides = [1, 1]} : vector<32x384xbf16> to vector<32x128xbf16>
    %15 = vector.extract_strided_slice %12 {offsets = [0, 256], sizes = [32, 128], strides = [1, 1]} : vector<32x384xbf16> to vector<32x128xbf16>
    %16 = vector.shape_cast %13 : vector<32x128xbf16> to vector<2x16x128xbf16>
    %17 = vector.shape_cast %14 : vector<32x128xbf16> to vector<2x16x128xbf16>
    %18 = vector.shape_cast %15 : vector<32x128xbf16> to vector<2x16x128xbf16>
    "tpu.trace_start"() <{level = 10 : i32, message = "bqd,bkd->bqk"}> : () -> ()
    %cst_5 = arith.constant dense<0.000000e+00> : vector<2x16x16xf32>
    %19 = tpu.matmul %16, %17, %cst_5 {dimension_numbers = #tpu.dot_dimension_numbers<[2], [2], [1], [1], [0, 0, 0, 1, 1, 1], [0], [0]>} : vector<2x16x128xbf16>, vector<2x16x128xbf16>, vector<2x16x16xf32> -> vector<2x16x16xf32>
    "tpu.trace_stop"() : () -> ()
    %cst_6 = arith.constant dense<0xFF800000> : vector<2x16xf32>
    %20 = vector.multi_reduction <maximumf>, %19, %cst_6 [2] : vector<2x16x16xf32> to vector<2x16xf32>
    %21 = vector.shape_cast %20 : vector<2x16xf32> to vector<2x16x1xf32>
    %22 = vector.broadcast %21 : vector<2x16x1xf32> to vector<2x16x16xf32>
    %23 = arith.subf %19, %22 : vector<2x16x16xf32>
    %24 = math.exp %23 : vector<2x16x16xf32>
    %cst_7 = arith.constant dense<0.000000e+00> : vector<2x16xf32>
    %25 = vector.multi_reduction <add>, %24, %cst_7 [2] : vector<2x16x16xf32> to vector<2x16xf32>
    %26 = vector.shape_cast %25 : vector<2x16xf32> to vector<2x16x1xf32>
    %27 = tpu.reciprocal %26 {approx = true} : vector<2x16x1xf32> -> vector<2x16x1xf32>
    %28 = vector.broadcast %27 : vector<2x16x1xf32> to vector<2x16x16xf32>
    %29 = arith.mulf %24, %28 : vector<2x16x16xf32>
    %30 = arith.truncf %29 : vector<2x16x16xf32> to vector<2x16x16xbf16>
    "tpu.trace_start"() <{level = 10 : i32, message = "bqk,bkd->bqd"}> : () -> ()
    %cst_8 = arith.constant dense<0.000000e+00> : vector<2x16x128xf32>
    %31 = tpu.matmul %30, %18, %cst_8 {dimension_numbers = #tpu.dot_dimension_numbers<[2], [1], [1], [2], [0, 0, 0, 1, 1, 2], [0], [0]>} : vector<2x16x16xbf16>, vector<2x16x128xbf16>, vector<2x16x128xf32> -> vector<2x16x128xf32>
    "tpu.trace_stop"() : () -> ()
    %32 = vector.shape_cast %31 : vector<2x16x128xf32> to vector<32x128xf32>
    %33 = arith.truncf %32 : vector<32x128xf32> to vector<32x128xbf16>
    %c0_9 = arith.constant 0 : index
    %c0_10 = arith.constant 0 : index
    %34 = vector.load %arg3[%c0_9, %c0_10] : memref<128x128xbf16, #tpu.memory_space<vmem>>, vector<128x128xbf16>
    %cst_11 = arith.constant dense<0.000000e+00> : vector<32x128xf32>
    %35 = tpu.matmul %33, %34, %cst_11 {dimension_numbers = #tpu.dot_dimension_numbers<[1], [0], [0], [1], [0, 0, 1, 1], [], []>} : vector<32x128xbf16>, vector<128x128xbf16>, vector<32x128xf32> -> vector<32x128xf32>
    %36 = arith.addf %0, %35 : vector<32x128xf32>
    %cst_12 = arith.constant dense<0.000000e+00> : vector<32xf32>
    %37 = vector.multi_reduction <add>, %36, %cst_12 [1] : vector<32x128xf32> to vector<32xf32>
    %38 = vector.shape_cast %37 : vector<32xf32> to vector<32x1xf32>
    %cst_13 = arith.constant 3.125000e-02 : f32
    %39 = vector.broadcast %cst_13 : f32 to vector<32x1xf32>
    %40 = arith.mulf %38, %39 : vector<32x1xf32>
    %41 = arith.mulf %36, %36 : vector<32x128xf32>
    %cst_14 = arith.constant dense<0.000000e+00> : vector<32xf32>
    %42 = vector.multi_reduction <add>, %41, %cst_14 [1] : vector<32x128xf32> to vector<32xf32>
    %43 = vector.shape_cast %42 : vector<32xf32> to vector<32x1xf32>
    %cst_15 = arith.constant 3.125000e-02 : f32
    %44 = vector.broadcast %cst_15 : f32 to vector<32x1xf32>
    %45 = arith.mulf %43, %44 : vector<32x1xf32>
    %46 = arith.mulf %40, %40 : vector<32x1xf32>
    %47 = arith.subf %45, %46 : vector<32x1xf32>
    %48 = vector.broadcast %40 : vector<32x1xf32> to vector<32x128xf32>
    %49 = arith.subf %36, %48 : vector<32x128xf32>
    %cst_16 = arith.constant 9.99999974E-6 : f32
    %50 = vector.broadcast %cst_16 : f32 to vector<32x1xf32>
    %51 = arith.addf %47, %50 : vector<32x1xf32>
    %52 = math.rsqrt %51 : vector<32x1xf32>
    %53 = vector.broadcast %52 : vector<32x1xf32> to vector<32x128xf32>
    %54 = arith.mulf %49, %53 : vector<32x128xf32>
    %55 = vector.broadcast %2 : vector<1x128xf32> to vector<32x128xf32>
    %56 = arith.mulf %54, %55 : vector<32x128xf32>
    %57 = vector.broadcast %3 : vector<1x128xf32> to vector<32x128xf32>
    %58 = arith.addf %56, %57 : vector<32x128xf32>
    %59 = arith.truncf %58 : vector<32x128xf32> to vector<32x128xbf16>
    %c0_17 = arith.constant 0 : index
    %c0_18 = arith.constant 0 : index
    %60 = vector.load %arg4[%c0_17, %c0_18] : memref<128x128xbf16, #tpu.memory_space<vmem>>, vector<128x128xbf16>
    %cst_19 = arith.constant dense<0.000000e+00> : vector<32x128xf32>
    %61 = tpu.matmul %59, %60, %cst_19 {dimension_numbers = #tpu.dot_dimension_numbers<[1], [0], [0], [1], [0, 0, 1, 1], [], []>} : vector<32x128xbf16>, vector<128x128xbf16>, vector<32x128xf32> -> vector<32x128xf32>
    %62 = vector.broadcast %4 : vector<1x128xf32> to vector<32x128xf32>
    %63 = arith.addf %61, %62 : vector<32x128xf32>
    %cst_20 = arith.constant 0.000000e+00 : f32
    %64 = vector.broadcast %cst_20 : f32 to vector<32x128xf32>
    %65 = arith.maximumf %63, %64 : vector<32x128xf32>
    %66 = arith.truncf %65 : vector<32x128xf32> to vector<32x128xbf16>
    %c0_21 = arith.constant 0 : index
    %c0_22 = arith.constant 0 : index
    %67 = vector.load %arg5[%c0_21, %c0_22] : memref<128x128xbf16, #tpu.memory_space<vmem>>, vector<128x128xbf16>
    %cst_23 = arith.constant dense<0.000000e+00> : vector<32x128xf32>
    %68 = tpu.matmul %66, %67, %cst_23 {dimension_numbers = #tpu.dot_dimension_numbers<[1], [0], [0], [1], [0, 0, 1, 1], [], []>} : vector<32x128xbf16>, vector<128x128xbf16>, vector<32x128xf32> -> vector<32x128xf32>
    %69 = vector.broadcast %5 : vector<1x128xf32> to vector<32x128xf32>
    %70 = arith.addf %68, %69 : vector<32x128xf32>
    %71 = arith.addf %58, %70 : vector<32x128xf32>
    %cst_24 = arith.constant dense<0.000000e+00> : vector<32xf32>
    %72 = vector.multi_reduction <add>, %71, %cst_24 [1] : vector<32x128xf32> to vector<32xf32>
    %73 = vector.shape_cast %72 : vector<32xf32> to vector<32x1xf32>
    %cst_25 = arith.constant 3.125000e-02 : f32
    %74 = vector.broadcast %cst_25 : f32 to vector<32x1xf32>
    %75 = arith.mulf %73, %74 : vector<32x1xf32>
    %76 = arith.mulf %71, %71 : vector<32x128xf32>
    %cst_26 = arith.constant dense<0.000000e+00> : vector<32xf32>
    %77 = vector.multi_reduction <add>, %76, %cst_26 [1] : vector<32x128xf32> to vector<32xf32>
    %78 = vector.shape_cast %77 : vector<32xf32> to vector<32x1xf32>
    %cst_27 = arith.constant 3.125000e-02 : f32
    %79 = vector.broadcast %cst_27 : f32 to vector<32x1xf32>
    %80 = arith.mulf %78, %79 : vector<32x1xf32>
    %81 = arith.mulf %75, %75 : vector<32x1xf32>
    %82 = arith.subf %80, %81 : vector<32x1xf32>
    %83 = vector.broadcast %75 : vector<32x1xf32> to vector<32x128xf32>
    %84 = arith.subf %71, %83 : vector<32x128xf32>
    %cst_28 = arith.constant 9.99999974E-6 : f32
    %85 = vector.broadcast %cst_28 : f32 to vector<32x1xf32>
    %86 = arith.addf %82, %85 : vector<32x1xf32>
    %87 = math.rsqrt %86 : vector<32x1xf32>
    %88 = vector.broadcast %87 : vector<32x1xf32> to vector<32x128xf32>
    %89 = arith.mulf %84, %88 : vector<32x128xf32>
    %90 = vector.broadcast %6 : vector<1x128xf32> to vector<32x128xf32>
    %91 = arith.mulf %89, %90 : vector<32x128xf32>
    %92 = vector.broadcast %7 : vector<1x128xf32> to vector<32x128xf32>
    %93 = arith.addf %91, %92 : vector<32x128xf32>
    %94 = arith.truncf %93 : vector<32x128xf32> to vector<32x128xbf16>
    %c0_29 = arith.constant 0 : index
    %c0_30 = arith.constant 0 : index
    %95 = vector.load %arg6[%c0_29, %c0_30] : memref<128x128xbf16, #tpu.memory_space<vmem>>, vector<128x128xbf16>
    %cst_31 = arith.constant dense<0.000000e+00> : vector<32x128xf32>
    %96 = tpu.matmul %94, %95, %cst_31 {dimension_numbers = #tpu.dot_dimension_numbers<[1], [0], [0], [1], [0, 0, 1, 1], [], []>} : vector<32x128xbf16>, vector<128x128xbf16>, vector<32x128xf32> -> vector<32x128xf32>
    %97 = vector.broadcast %8 : vector<1x128xf32> to vector<32x128xf32>
    %98 = arith.addf %96, %97 : vector<32x128xf32>
    %c0_32 = arith.constant 0 : index
    %c0_33 = arith.constant 0 : index
    %99 = vector.load %arg1[%c0_32, %c0_33] : memref<32x1xi32, #tpu.memory_space<vmem>>, vector<32x1xi32>
    %cst_34 = arith.constant dense<0xFF800000> : vector<32xf32>
    %100 = vector.multi_reduction <maximumf>, %98, %cst_34 [1] : vector<32x128xf32> to vector<32xf32>
    %101 = vector.shape_cast %100 : vector<32xf32> to vector<32x1xf32>
    %102 = vector.broadcast %101 : vector<32x1xf32> to vector<32x128xf32>
    %103 = arith.subf %98, %102 : vector<32x128xf32>
    %104 = math.exp %103 : vector<32x128xf32>
    %cst_35 = arith.constant dense<0.000000e+00> : vector<32xf32>
    %105 = vector.multi_reduction <add>, %104, %cst_35 [1] : vector<32x128xf32> to vector<32xf32>
    %106 = vector.shape_cast %105 : vector<32xf32> to vector<32x1xf32>
    %107 = math.log %106 : vector<32x1xf32>
    %108 = arith.addf %107, %101 : vector<32x1xf32>
    %109 = tpu.iota {dimensions = array<i32: 1>} : vector<32x128xi32>
    %110 = vector.broadcast %99 : vector<32x1xi32> to vector<32x128xi32>
    %111 = arith.cmpi eq, %109, %110 : vector<32x128xi32>
    %112 = arith.extui %111 : vector<32x128xi1> to vector<32x128xi32>
    %113 = arith.sitofp %112 : vector<32x128xi32> to vector<32x128xf32>
    %114 = arith.mulf %98, %113 : vector<32x128xf32>
    %cst_36 = arith.constant dense<0.000000e+00> : vector<32xf32>
    %115 = vector.multi_reduction <add>, %114, %cst_36 [1] : vector<32x128xf32> to vector<32xf32>
    %116 = vector.shape_cast %115 : vector<32xf32> to vector<32x1xf32>
    %117 = arith.subf %108, %116 : vector<32x1xf32>
    %c0_i32 = arith.constant 0 : i32
    %118 = vector.broadcast %c0_i32 : i32 to vector<32x1xi32>
    %119 = arith.cmpi ne, %99, %118 : vector<32x1xi32>
    %120 = arith.extui %119 : vector<32x1xi1> to vector<32x1xi32>
    %121 = arith.sitofp %120 : vector<32x1xi32> to vector<32x1xf32>
    %122 = arith.mulf %117, %121 : vector<32x1xf32>
    %123 = vector.shape_cast %122 : vector<32x1xf32> to vector<1x32x1xf32>
    %cst_37 = arith.constant dense<0.000000e+00> : vector<1xf32>
    %124 = vector.multi_reduction <add>, %123, %cst_37 [1, 2] : vector<1x32x1xf32> to vector<1xf32>
    %125 = vector.shape_cast %124 : vector<1xf32> to vector<1x1x1xf32>
    %126 = vector.extract %125[0, 0, 0] : f32 from vector<1x1x1xf32>
    %127 = vector.shape_cast %121 : vector<32x1xf32> to vector<1x32x1xf32>
    %cst_38 = arith.constant dense<0.000000e+00> : vector<1xf32>
    %128 = vector.multi_reduction <add>, %127, %cst_38 [1, 2] : vector<1x32x1xf32> to vector<1xf32>
    %129 = vector.shape_cast %128 : vector<1xf32> to vector<1x1x1xf32>
    %130 = vector.extract %129[0, 0, 0] : f32 from vector<1x1x1xf32>
    %cst_39 = arith.constant 1.000000e+00 : f32
    %131 = arith.maximumf %130, %cst_39 : f32
    %132 = arith.divf %126, %131 : f32
    %c0_40 = arith.constant 0 : index
    %c0_41 = arith.constant 0 : index
    %133 = memref.load %arg8[%c0_40, %c0_41] : memref<1x1xf32, #tpu.memory_space<smem>>
    memref.store %132, %arg8[%c0_40, %c0_41] : memref<1x1xf32, #tpu.memory_space<smem>>
    return
  }
}

</mosaic_0001>

<llo_original>
// kernel: bert_mlm_forward.1
$region0: #{bert_mlm_forward.1}
  #allocation0 [shape = 'u32[]', space=smem, size = 0x4, offset = 0x4, fixed_abs, tag = 'smem constant byte address 0x4 - core index']
  #allocation1 [shape = 'u32[72,128]{1,0:T(1,128)}', space=vmem, size = 0x9000, scoped, tag = 'internal scratch']
  %s0 = inlined_call_operand.vmem [shape: f32[32,128], index: 0, kind: input, shape index: {}]
  %s1 = inlined_call_operand.vmem [shape: s32[32,1], index: 1, kind: input, shape index: {}]
  %s2 = inlined_call_operand.vmem [shape: bf16[128,384], index: 2, kind: input, shape index: {}]
  %s3 = inlined_call_operand.vmem [shape: bf16[128,128], index: 3, kind: input, shape index: {}]
  %s4 = inlined_call_operand.vmem [shape: bf16[128,128], index: 4, kind: input, shape index: {}]
  %s5 = inlined_call_operand.vmem [shape: bf16[128,128], index: 5, kind: input, shape index: {}]
  %s6 = inlined_call_operand.vmem [shape: bf16[128,128], index: 6, kind: input, shape index: {}]
  %s7 = inlined_call_operand.vmem [shape: f32[8,128], index: 7, kind: input, shape index: {}]
  %s8 = inlined_call_operand.hbm [shape: f32[1,1], index: 8, kind: output, shape index: {}]
  %s9 = sld [smem:[#allocation0]]
  $region42: #{bert_mlm_forward.1} parent=0
    _
  %s11 = ssub.s32 1, %s9
  %s12 = scalar_select 0, %s11, %s9
  $region1: #{bert_mlm_forward.1} parent=0
    #allocation2 [shape = 'u8[512]{0}', space=smem, size = 0x200, scoped, tag = 'output window, operand 0, single buffered']
    #allocation3 [shape = 's32[1]{0}', space=sflag, size = 0x4, scoped, tag = 'scoped memory for bert_mlm_forward.1']
    %13 = vsyncpa [#allocation3], 0
    // Predicated region
    $region2: #{bert_mlm_forward.1} parent=1 // pred_check
      _
    $region3: #{bert_mlm_forward.1} parent=1 // pred_check_branch
      %15 = sbr.rel (0) target = $region5
    $region4: #{bert_mlm_forward.1} parent=1 // pred_region
      _
    $region5: #{bert_mlm_forward.1} parent=1 // pred_fallthru
      _
    // Predicated region
    $region6: #{bert_mlm_forward.1} parent=1 // pred_check
      _
    $region7: #{bert_mlm_forward.1} parent=1 // pred_check_branch
      %17 = sbr.rel (0) target = $region9
    $region8: #{bert_mlm_forward.1} parent=1 // pred_region
      _
    $region9: #{bert_mlm_forward.1} parent=1 // pred_fallthru
      _
    // Predicated region
    $region10: #{bert_mlm_forward.1} parent=1 // pred_check
      _
    $region11: #{bert_mlm_forward.1} parent=1 // pred_check_branch
      %19 = sbr.rel (0) target = $region13
    $region12: #{bert_mlm_forward.1} parent=1 // pred_region
      _
    $region13: #{bert_mlm_forward.1} parent=1 // pred_fallthru
      _
    // Predicated region
    $region14: #{bert_mlm_forward.1} parent=1 // pred_check
      _
    $region15: #{bert_mlm_forward.1} parent=1 // pred_check_branch
      %21 = sbr.rel (0) target = $region17
    $region16: #{bert_mlm_forward.1} parent=1 // pred_region
      _
    $region17: #{bert_mlm_forward.1} parent=1 // pred_fallthru
      _
    // Predicated region
    $region18: #{bert_mlm_forward.1} parent=1 // pred_check
      _
    $region19: #{bert_mlm_forward.1} parent=1 // pred_check_branch
      %23 = sbr.rel (0) target = $region21
    $region20: #{bert_mlm_forward.1} parent=1 // pred_region
      _
    $region21: #{bert_mlm_forward.1} parent=1 // pred_fallthru
      _
    // Predicated region
    $region22: #{bert_mlm_forward.1} parent=1 // pred_check
      _
    $region23: #{bert_mlm_forward.1} parent=1 // pred_check_branch
      %25 = sbr.rel (0) target = $region25
    $region24: #{bert_mlm_forward.1} parent=1 // pred_region
      _
    $region25: #{bert_mlm_forward.1} parent=1 // pred_fallthru
      _
    // Predicated region
    $region26: #{bert_mlm_forward.1} parent=1 // pred_check
      _
    $region27: #{bert_mlm_forward.1} parent=1 // pred_check_branch
      %27 = sbr.rel (0) target = $region29
    $region28: #{bert_mlm_forward.1} parent=1 // pred_region
      _
    $region29: #{bert_mlm_forward.1} parent=1 // pred_fallthru
      _
    // Predicated region
    $region30: #{bert_mlm_forward.1} parent=1 // pred_check
      _
    $region31: #{bert_mlm_forward.1} parent=1 // pred_check_branch
      %29 = sbr.rel (0) target = $region33
    $region32: #{bert_mlm_forward.1} parent=1 // pred_region
      _
    $region33: #{bert_mlm_forward.1} parent=1 // pred_fallthru
      _
    %v31 = vld [vmem:[%s0] sm:$0xff]
    %v32 = vld [vmem:[%s0 + $0x8] sm:$0xff]
    %v33 = vld [vmem:[%s0 + $0x10] sm:$0xff]
    %v34 = vld [vmem:[%s0 + $0x18] sm:$0xff]
    %v35 = vld [vmem:[%s7] sm:$0xff]
    %v36 = vpack.c.bf16 %v32, %v31
    %v37 = vpack.c.bf16 %v34, %v33
    %v38 = vld [vmem:[%s2] sm:$0xff]
    %v39 = vld [vmem:[%s2 + $0x8] sm:$0xf]
    %v40 = vld [vmem:[%s2 + $0xc] sm:$0xff]
    %v41 = vld [vmem:[%s2 + $0x14] sm:$0xf]
    %v42 = vld [vmem:[%s2 + $0x18] sm:$0xff]
    %v43 = vld [vmem:[%s2 + $0x20] sm:$0xf]
    %v44 = vld [vmem:[%s2 + $0x24] sm:$0xff]
    %v45 = vld [vmem:[%s2 + $0x2c] sm:$0xf]
    %v46 = vld [vmem:[%s2 + $0x30] sm:$0xff]
    %v47 = vld [vmem:[%s2 + $0x38] sm:$0xf]
    %v48 = vld [vmem:[%s2 + $0x3c] sm:$0xff]
    %v49 = vld [vmem:[%s2 + $0x44] sm:$0xf]
    %v50 = vld [vmem:[%s2 + $0x48] sm:$0xff]
    %v51 = vld [vmem:[%s2 + $0x50] sm:$0xf]
    %v52 = vld [vmem:[%s2 + $0x54] sm:$0xff]
    %v53 = vld [vmem:[%s2 + $0x5c] sm:$0xf]
    %v54 = vld [vmem:[%s2 + $0x60] sm:$0xff]
    %v55 = vld [vmem:[%s2 + $0x68] sm:$0xf]
    %v56 = vld [vmem:[%s2 + $0x6c] sm:$0xff]
    %v57 = vld [vmem:[%s2 + $0x74] sm:$0xf]
    %v58 = vld [vmem:[%s2 + $0x78] sm:$0xff]
    %v59 = vld [vmem:[%s2 + $0x80] sm:$0xf]
    %v60 = vld [vmem:[%s2 + $0x84] sm:$0xff]
    %v61 = vld [vmem:[%s2 + $0x8c] sm:$0xf]
    %v62 = vld [vmem:[%s2 + $0x90] sm:$0xff]
    %v63 = vld [vmem:[%s2 + $0x98] sm:$0xf]
    %v64 = vld [vmem:[%s2 + $0x9c] sm:$0xff]
    %v65 = vld [vmem:[%s2 + $0xa4] sm:$0xf]
    %v66 = vld [vmem:[%s2 + $0xa8] sm:$0xff]
    %v67 = vld [vmem:[%s2 + $0xb0] sm:$0xf]
    %v68 = vld [vmem:[%s2 + $0xb4] sm:$0xff]
    %v69 = vld [vmem:[%s2 + $0xbc] sm:$0xf]
    %v102 = vunpack.c.l.b16 %v38
    %v103 = vunpack.c.h.b16 %v38
    %v104 = vunpack.c.l.b16 %v39
    %v105 = vunpack.c.l.b16 %v40
    %v106 = vunpack.c.h.b16 %v40
    %v107 = vunpack.c.l.b16 %v41
    %v108 = vunpack.c.l.b16 %v42
    %v109 = vunpack.c.h.b16 %v42
    %v110 = vunpack.c.l.b16 %v43
    %v111 = vunpack.c.l.b16 %v44
    %v112 = vunpack.c.h.b16 %v44
    %v113 = vunpack.c.l.b16 %v45
    %v114 = vunpack.c.l.b16 %v46
    %v115 = vunpack.c.h.b16 %v46
    %v116 = vunpack.c.l.b16 %v47
    %v117 = vunpack.c.l.b16 %v48
    %v118 = vunpack.c.h.b16 %v48
    %v119 = vunpack.c.l.b16 %v49
    %v120 = vunpack.c.l.b16 %v50
    %v121 = vunpack.c.h.b16 %v50
    %v122 = vunpack.c.l.b16 %v51
    %v123 = vunpack.c.l.b16 %v52
    %v124 = vunpack.c.h.b16 %v52
    %v125 = vunpack.c.l.b16 %v53
    %v126 = vunpack.c.l.b16 %v54
    %v127 = vunpack.c.h.b16 %v54
    %v128 = vunpack.c.l.b16 %v55
    %v129 = vunpack.c.l.b16 %v56
    %v130 = vunpack.c.h.b16 %v56
    %v131 = vunpack.c.l.b16 %v57
    %v132 = vunpack.c.l.b16 %v58
    %v133 = vunpack.c.h.b16 %v58
    %v134 = vunpack.c.l.b16 %v59
    %v135 = vunpack.c.l.b16 %v60
    %v136 = vunpack.c.h.b16 %v60
    %v137 = vunpack.c.l.b16 %v61
    %v138 = vunpack.c.l.b16 %v62
    %v139 = vunpack.c.h.b16 %v62
    %v140 = vunpack.c.l.b16 %v63
    %v141 = vunpack.c.l.b16 %v64
    %v142 = vunpack.c.h.b16 %v64
    %v143 = vunpack.c.l.b16 %v65
    %v144 = vunpack.c.l.b16 %v66
    %v145 = vunpack.c.h.b16 %v66
    %v146 = vunpack.c.l.b16 %v67
    %v147 = vunpack.c.l.b16 %v68
    %v148 = vunpack.c.h.b16 %v68
    %v149 = vunpack.c.l.b16 %v69
    %v150 = vpack.c.b16 %v105, %v102
    %v151 = vpack.c.b16 %v106, %v103
    %v152 = vpack.c.b16 %v107, %v104
    %v153 = vpack.c.b16 %v111, %v108
    %v154 = vpack.c.b16 %v112, %v109
    %v155 = vpack.c.b16 %v113, %v110
    %v156 = vpack.c.b16 %v117, %v114
    %v157 = vpack.c.b16 %v118, %v115
    %v158 = vpack.c.b16 %v119, %v116
    %v159 = vpack.c.b16 %v123, %v120
    %v160 = vpack.c.b16 %v124, %v121
    %v161 = vpack.c.b16 %v125, %v122
    %v162 = vpack.c.b16 %v129, %v126
    %v163 = vpack.c.b16 %v130, %v127
    %v164 = vpack.c.b16 %v131, %v128
    %v165 = vpack.c.b16 %v135, %v132
    %v166 = vpack.c.b16 %v136, %v133
    %v167 = vpack.c.b16 %v137, %v134
    %v168 = vpack.c.b16 %v141, %v138
    %v169 = vpack.c.b16 %v142, %v139
    %v170 = vpack.c.b16 %v143, %v140
    %v171 = vpack.c.b16 %v147, %v144
    %v172 = vpack.c.b16 %v148, %v145
    %v173 = vpack.c.b16 %v149, %v146
    %198 = vmatpush.bf16.msra.mxu0 %v171
    %199 = vmatpush.bf16.msra.mxu0 %v168
    %200 = vmatpush.bf16.msra.mxu0 %v165
    %201 = vmatpush.bf16.msra.mxu0 %v162
    %202 = vmatpush.bf16.msra.mxu0 %v159
    %203 = vmatpush.bf16.msra.mxu0 %v156
    %204 = vmatpush.bf16.msra.mxu0 %v153
    %205 = vmatpush.bf16.msra.mxu0 %v150
    %206 = vmatmul.bf16.gmra.mxu0 %v36
    %v207 = vpop.f32.mrf.mxu0
    %v208 = vadd.f32 0.0, %v207
    %v209 = vpop.f32.mrf.mxu0
    %v210 = vadd.f32 0.0, %v209
    %211 = vmatmul.bf16.gmra.mxu0 %v37
    %v212 = vpop.f32.mrf.mxu0
    %v213 = vadd.f32 0.0, %v212
    %v214 = vpop.f32.mrf.mxu0
    %v215 = vadd.f32 0.0, %v214
    %216 = vdwg.mxu0
    %217 = vmatpush.bf16.msra.mxu0 %v172
    %218 = vmatpush.bf16.msra.mxu0 %v169
    %219 = vmatpush.bf16.msra.mxu0 %v166
    %220 = vmatpush.bf16.msra.mxu0 %v163
    %221 = vmatpush.bf16.msra.mxu0 %v160
    %222 = vmatpush.bf16.msra.mxu0 %v157
    %223 = vmatpush.bf16.msra.mxu0 %v154
    %224 = vmatpush.bf16.msra.mxu0 %v151
    %225 = vmatmul.bf16.gmra.mxu0 %v36
    %v226 = vpop.f32.mrf.mxu0
    %v227 = vadd.f32 0.0, %v226
    %v228 = vpop.f32.mrf.mxu0
    %v229 = vadd.f32 0.0, %v228
    %230 = vmatmul.bf16.gmra.mxu0 %v37
    %v231 = vpop.f32.mrf.mxu0
    %v232 = vadd.f32 0.0, %v231
    %v233 = vpop.f32.mrf.mxu0
    %v234 = vadd.f32 0.0, %v233
    %235 = vdwg.mxu0
    %236 = vmatpush.bf16.msra.mxu0 %v173
    %237 = vmatpush.bf16.msra.mxu0 %v170
    %238 = vmatpush.bf16.msra.mxu0 %v167
    %239 = vmatpush.bf16.msra.mxu0 %v164
    %240 = vmatpush.bf16.msra.mxu0 %v161
    %241 = vmatpush.bf16.msra.mxu0 %v158
    %242 = vmatpush.bf16.msra.mxu0 %v155
    %243 = vmatpush.bf16.msra.mxu0 %v152
    %244 = vmatmul.bf16.gmra.mxu0 %v36
    %v245 = vpop.f32.mrf.mxu0
    %v246 = vadd.f32 0.0, %v245
    %v247 = vpop.f32.mrf.mxu0
    %v248 = vadd.f32 0.0, %v247
    %249 = vmatmul.bf16.gmra.mxu0 %v37
    %v250 = vpop.f32.mrf.mxu0
    %v251 = vadd.f32 0.0, %v250
    %v252 = vpop.f32.mrf.mxu0
    %v253 = vadd.f32 0.0, %v252
    %254 = vdwg.mxu0
    %v255 = vpack.c.bf16 %v227, %v208
    %v256 = vpack.c.bf16 %v246, %v246
    %v257 = vpack.c.bf16 %v229, %v210
    %v258 = vpack.c.bf16 %v248, %v248
    %v259 = vpack.c.bf16 %v232, %v213
    %v260 = vpack.c.bf16 %v251, %v251
    %v261 = vpack.c.bf16 %v234, %v215
    %v262 = vpack.c.bf16 %v253, %v253
    %v267 = vrot.slane %v255, 4
    %v268 = vrot.slane %v257, 4
    %v269 = vrot.slane %v259, 4
    %v270 = vrot.slane %v261, 4
    %v271 = vunpack.c.l.b16 %v255
    %v272 = vunpack.c.l.b16 %v257
    %v273 = vpack.c.b16 %v272, %v271
    %v275 = vunpack.c.l.b16 %v267
    %v276 = vunpack.c.l.b16 %v268
    %v277 = vpack.c.b16 %v276, %v275
    %279 = vmatpush.bf16.xpose.msra.mxu0 0
    %280 = vmatpush.bf16.xpose.msra.mxu0 0
    %281 = vmatpush.bf16.xpose.msra.mxu0 0
    %282 = vmatpush.bf16.xpose.msra.mxu0 0
    %283 = vmatpush.bf16.xpose.msra.mxu0 0
    %284 = vmatpush.bf16.xpose.msra.mxu0 0
    %285 = vmatpush.bf16.xpose.msra.mxu0 0
    %286 = vmatpush.bf16.xpose.msra.mxu0 %v277
    %287 = vmatmul.bf16.gmra.mxu0 %v273
    %v288 = vpop.f32.mrf.mxu0
    %v289 = vadd.f32 0.0, %v288
    %v290 = vpop.f32.mrf.mxu0
    %v291 = vadd.f32 0.0, %v290
    %292 = vdwg.mxu0
    %v293 = vunpack.c.l.b16 %v259
    %v294 = vunpack.c.l.b16 %v261
    %v295 = vpack.c.b16 %v294, %v293
    %v297 = vunpack.c.l.b16 %v269
    %v298 = vunpack.c.l.b16 %v270
    %v299 = vpack.c.b16 %v298, %v297
    %301 = vmatpush.bf16.xpose.msra.mxu0 0
    %302 = vmatpush.bf16.xpose.msra.mxu0 0
    %303 = vmatpush.bf16.xpose.msra.mxu0 0
    %304 = vmatpush.bf16.xpose.msra.mxu0 0
    %305 = vmatpush.bf16.xpose.msra.mxu0 0
    %306 = vmatpush.bf16.xpose.msra.mxu0 0
    %307 = vmatpush.bf16.xpose.msra.mxu0 0
    %308 = vmatpush.bf16.xpose.msra.mxu0 %v299
    %309 = vmatmul.bf16.gmra.mxu0 %v295
    %v310 = vpop.f32.mrf.mxu0
    %v311 = vadd.f32 0.0, %v310
    %v312 = vpop.f32.mrf.mxu0
    %v313 = vadd.f32 0.0, %v312
    %314 = vdwg.mxu0
    %vm315 = vcmask 130048
    %v316 = vsel %vm315, %v289, -inf
    %317 = vmax.xlane.f32.xlu0 %v316
    %v318 = vpop.xlane.xlu0 %317
    %v319 = vsel %vm315, %v291, -inf
    %320 = vmax.xlane.f32.xlu0 %v319
    %v321 = vpop.xlane.xlu0 %320
    %v322 = vsel %vm315, %v311, -inf
    %323 = vmax.xlane.f32.xlu0 %v322
    %v324 = vpop.xlane.xlu0 %323
    %v325 = vsel %vm315, %v313, -inf
    %326 = vmax.xlane.f32.xlu0 %v325
    %v327 = vpop.xlane.xlu0 %326
    %v328 = vsub.f32 %v289, %v318
    %v329 = vsub.f32 %v291, %v321
    %v330 = vsub.f32 %v311, %v324
    %v331 = vsub.f32 %v313, %v327
    %v332 = vmul.f32 %v328, 1.442695
    %v333 = vpow.pop %v332
    %v334 = vmul.f32 %v329, 1.442695
    %v335 = vpow.pop %v334
    %v336 = vmul.f32 %v330, 1.442695
    %v337 = vpow.pop %v336
    %v338 = vmul.f32 %v331, 1.442695
    %v339 = vpow.pop %v338
    %v340 = vsel %vm315, %v333, 0.0
    %341 = vadd.xlane.f32.xlu0 %v340
    %v342 = vpop.xlane.xlu0 %341
    %v343 = vsel %vm315, %v335, 0.0
    %344 = vadd.xlane.f32.xlu0 %v343
    %v345 = vpop.xlane.xlu0 %344
    %v346 = vsel %vm315, %v337, 0.0
    %347 = vadd.xlane.f32.xlu0 %v346
    %v348 = vpop.xlane.xlu0 %347
    %v349 = vsel %vm315, %v339, 0.0
    %350 = vadd.xlane.f32.xlu0 %v349
    %v351 = vpop.xlane.xlu0 %350
    %v352 = vrcp.pop %v342
    %v353 = vrcp.pop %v345
    %v354 = vrcp.pop %v348
    %v355 = vrcp.pop %v351
    %v356 = vmul.f32 %v333, %v352
    %v357 = vmul.f32 %v335, %v353
    %v358 = vmul.f32 %v337, %v354
    %v359 = vmul.f32 %v339, %v355
    %v360 = vpack.c.bf16 %v356, %v356
    %v361 = vpack.c.bf16 %v357, %v357
    %v362 = vpack.c.bf16 %v358, %v358
    %v363 = vpack.c.bf16 %v359, %v359
    %v366 = vunpack.c.l.b16 %v360
    %v367 = vunpack.c.l.b16 %v361
    %v368 = vpack.c.b16 %v367, %v366
    %v371 = vunpack.c.l.b16 %v256
    %v372 = vunpack.c.l.b16 %v258
    %v373 = vpack.c.b16 %v372, %v371
    %v376 = vsel %vm315, %v368, 0
    %378 = vmatpush.bf16.msra.mxu0 0
    %379 = vmatpush.bf16.msra.mxu0 0
    %380 = vmatpush.bf16.msra.mxu0 0
    %381 = vmatpush.bf16.msra.mxu0 0
    %382 = vmatpush.bf16.msra.mxu0 0
    %383 = vmatpush.bf16.msra.mxu0 0
    %384 = vmatpush.bf16.msra.mxu0 0
    %385 = vmatpush.bf16.msra.mxu0 %v373
    %386 = vmatmul.bf16.gmra.mxu0 %v376
    %v387 = vpop.f32.mrf.mxu0
    %v388 = vadd.f32 0.0, %v387
    %v389 = vpop.f32.mrf.mxu0
    %v390 = vadd.f32 0.0, %v389
    %391 = vdwg.mxu0
    %v394 = vunpack.c.l.b16 %v362
    %v395 = vunpack.c.l.b16 %v363
    %v396 = vpack.c.b16 %v395, %v394
    %v399 = vunpack.c.l.b16 %v260
    %v400 = vunpack.c.l.b16 %v262
    %v401 = vpack.c.b16 %v400, %v399
    %v404 = vsel %vm315, %v396, 0
    %406 = vmatpush.bf16.msra.mxu0 0
    %407 = vmatpush.bf16.msra.mxu0 0
    %408 = vmatpush.bf16.msra.mxu0 0
    %409 = vmatpush.bf16.msra.mxu0 0
    %410 = vmatpush.bf16.msra.mxu0 0
    %411 = vmatpush.bf16.msra.mxu0 0
    %412 = vmatpush.bf16.msra.mxu0 0
    %413 = vmatpush.bf16.msra.mxu0 %v401
    %414 = vmatmul.bf16.gmra.mxu0 %v404
    %v415 = vpop.f32.mrf.mxu0
    %v416 = vadd.f32 0.0, %v415
    %v417 = vpop.f32.mrf.mxu0
    %v418 = vadd.f32 0.0, %v417
    %419 = vdwg.mxu0
    %v420 = vpack.c.bf16 %v390, %v388
    %v421 = vpack.c.bf16 %v418, %v416
    %v422 = vld [vmem:[%s3] sm:$0xf]
    %v423 = vld [vmem:[%s3 + $0x4] sm:$0xf]
    %v424 = vld [vmem:[%s3 + $0x8] sm:$0xf]
    %v425 = vld [vmem:[%s3 + $0xc] sm:$0xf]
    %v426 = vld [vmem:[%s3 + $0x10] sm:$0xf]
    %v427 = vld [vmem:[%s3 + $0x14] sm:$0xf]
    %v428 = vld [vmem:[%s3 + $0x18] sm:$0xf]
    %v429 = vld [vmem:[%s3 + $0x1c] sm:$0xf]
    %v430 = vld [vmem:[%s3 + $0x20] sm:$0xf]
    %v431 = vld [vmem:[%s3 + $0x24] sm:$0xf]
    %v432 = vld [vmem:[%s3 + $0x28] sm:$0xf]
    %v433 = vld [vmem:[%s3 + $0x2c] sm:$0xf]
    %v434 = vld [vmem:[%s3 + $0x30] sm:$0xf]
    %v435 = vld [vmem:[%s3 + $0x34] sm:$0xf]
    %v436 = vld [vmem:[%s3 + $0x38] sm:$0xf]
    %v437 = vld [vmem:[%s3 + $0x3c] sm:$0xf]
    %v454 = vunpack.c.l.b16 %v422
    %v455 = vunpack.c.l.b16 %v423
    %v456 = vunpack.c.l.b16 %v424
    %v457 = vunpack.c.l.b16 %v425
    %v458 = vunpack.c.l.b16 %v426
    %v459 = vunpack.c.l.b16 %v427
    %v460 = vunpack.c.l.b16 %v428
    %v461 = vunpack.c.l.b16 %v429
    %v462 = vunpack.c.l.b16 %v430
    %v463 = vunpack.c.l.b16 %v431
    %v464 = vunpack.c.l.b16 %v432
    %v465 = vunpack.c.l.b16 %v433
    %v466 = vunpack.c.l.b16 %v434
    %v467 = vunpack.c.l.b16 %v435
    %v468 = vunpack.c.l.b16 %v436
    %v469 = vunpack.c.l.b16 %v437
    %v470 = vpack.c.b16 %v455, %v454
    %v471 = vpack.c.b16 %v457, %v456
    %v472 = vpack.c.b16 %v459, %v458
    %v473 = vpack.c.b16 %v461, %v460
    %v474 = vpack.c.b16 %v463, %v462
    %v475 = vpack.c.b16 %v465, %v464
    %v476 = vpack.c.b16 %v467, %v466
    %v477 = vpack.c.b16 %v469, %v468
    %486 = vmatpush.bf16.msra.mxu0 %v477
    %487 = vmatpush.bf16.msra.mxu0 %v476
    %488 = vmatpush.bf16.msra.mxu0 %v475
    %489 = vmatpush.bf16.msra.mxu0 %v474
    %490 = vmatpush.bf16.msra.mxu0 %v473
    %491 = vmatpush.bf16.msra.mxu0 %v472
    %492 = vmatpush.bf16.msra.mxu0 %v471
    %493 = vmatpush.bf16.msra.mxu0 %v470
    %494 = vmatmul.bf16.gmra.mxu0 %v420
    %v495 = vpop.f32.mrf.mxu0
    %v496 = vadd.f32 0.0, %v495
    %v497 = vpop.f32.mrf.mxu0
    %v498 = vadd.f32 0.0, %v497
    %499 = vmatmul.bf16.gmra.mxu0 %v421
    %v500 = vpop.f32.mrf.mxu0
    %v501 = vadd.f32 0.0, %v500
    %v502 = vpop.f32.mrf.mxu0
    %v503 = vadd.f32 0.0, %v502
    %504 = vdwg.mxu0
    %v505 = vadd.f32 %v31, %v496
    %v506 = vadd.f32 %v32, %v498
    %v507 = vadd.f32 %v33, %v501
    %v508 = vadd.f32 %v34, %v503
    %509 = vadd.xlane.f32.xlu0 %v505
    %v510 = vpop.xlane.xlu0 %509
    %511 = vadd.xlane.f32.xlu0 %v506
    %v512 = vpop.xlane.xlu0 %511
    %513 = vadd.xlane.f32.xlu0 %v507
    %v514 = vpop.xlane.xlu0 %513
    %515 = vadd.xlane.f32.xlu0 %v508
    %v516 = vpop.xlane.xlu0 %515
    %v517 = vmul.f32 %v510, 0.03125
    %v518 = vmul.f32 %v512, 0.03125
    %v519 = vmul.f32 %v514, 0.03125
    %v520 = vmul.f32 %v516, 0.03125
    %v521 = vmul.f32 %v505, %v505
    %v522 = vmul.f32 %v506, %v506
    %v523 = vmul.f32 %v507, %v507
    %v524 = vmul.f32 %v508, %v508
    %525 = vadd.xlane.f32.xlu0 %v521
    %v526 = vpop.xlane.xlu0 %525
    %527 = vadd.xlane.f32.xlu0 %v522
    %v528 = vpop.xlane.xlu0 %527
    %529 = vadd.xlane.f32.xlu0 %v523
    %v530 = vpop.xlane.xlu0 %529
    %531 = vadd.xlane.f32.xlu0 %v524
    %v532 = vpop.xlane.xlu0 %531
    %v533 = vmul.f32 %v526, 0.03125
    %v534 = vmul.f32 %v528, 0.03125
    %v535 = vmul.f32 %v530, 0.03125
    %v536 = vmul.f32 %v532, 0.03125
    %v537 = vmul.f32 %v517, %v517
    %v538 = vmul.f32 %v518, %v518
    %v539 = vmul.f32 %v519, %v519
    %v540 = vmul.f32 %v520, %v520
    %v541 = vsub.f32 %v533, %v537
    %v542 = vsub.f32 %v534, %v538
    %v543 = vsub.f32 %v535, %v539
    %v544 = vsub.f32 %v536, %v540
    %v545 = vsub.f32 %v505, %v517
    %v546 = vsub.f32 %v506, %v518
    %v547 = vsub.f32 %v507, %v519
    %v548 = vsub.f32 %v508, %v520
    %v549 = vadd.f32 %v541, 1e-05
    %v550 = vadd.f32 %v542, 1e-05
    %v551 = vadd.f32 %v543, 1e-05
    %v552 = vadd.f32 %v544, 1e-05
    %v553 = vrsqrt.pop %v549
    %v554 = vmul.f32 %v553, %v549
    %v555 = vmul.f32 %v554, %v553
    %v556 = vmul.f32 0.5, %v555
    %v557 = vsub.f32 1.5, %v556
    %v558 = vmul.f32 %v553, %v557
    %vm559 = vweird.f32 %v549
    %vm560 = vweird.f32 %v553
    %vm561 = vmor %vm559, %vm560
    %v562 = vsel %vm561, %v553, %v558
    %v563 = vrsqrt.pop %v550
    %v564 = vmul.f32 %v563, %v550
    %v565 = vmul.f32 %v564, %v563
    %v566 = vmul.f32 0.5, %v565
    %v567 = vsub.f32 1.5, %v566
    %v568 = vmul.f32 %v563, %v567
    %vm569 = vweird.f32 %v550
    %vm570 = vweird.f32 %v563
    %vm571 = vmor %vm569, %vm570
    %v572 = vsel %vm571, %v563, %v568
    %v573 = vrsqrt.pop %v551
    %v574 = vmul.f32 %v573, %v551
    %v575 = vmul.f32 %v574, %v573
    %v576 = vmul.f32 0.5, %v575
    %v577 = vsub.f32 1.5, %v576
    %v578 = vmul.f32 %v573, %v577
    %vm579 = vweird.f32 %v551
    %vm580 = vweird.f32 %v573
    %vm581 = vmor %vm579, %vm580
    %v582 = vsel %vm581, %v573, %v578
    %v583 = vrsqrt.pop %v552
    %v584 = vmul.f32 %v583, %v552
    %v585 = vmul.f32 %v584, %v583
    %v586 = vmul.f32 0.5, %v585
    %v587 = vsub.f32 1.5, %v586
    %v588 = vmul.f32 %v583, %v587
    %vm589 = vweird.f32 %v552
    %vm590 = vweird.f32 %v583
    %vm591 = vmor %vm589, %vm590
    %v592 = vsel %vm591, %v583, %v588
    %v593 = vmul.f32 %v545, %v562
    %v594 = vmul.f32 %v546, %v572
    %v595 = vmul.f32 %v547, %v582
    %v596 = vmul.f32 %v548, %v592
    %v597 = vperm.slane %v35, 0
    %v598 = vmul.f32 %v593, %v597
    %v599 = vmul.f32 %v594, %v597
    %v600 = vmul.f32 %v595, %v597
    %v601 = vmul.f32 %v596, %v597
    %v602 = vperm.slane %v35, 1
    %v603 = vadd.f32 %v598, %v602
    %v604 = vadd.f32 %v599, %v602
    %v605 = vadd.f32 %v600, %v602
    %v606 = vadd.f32 %v601, %v602
    %v607 = vpack.c.bf16 %v604, %v603
    %v608 = vpack.c.bf16 %v606, %v605
    %v609 = vld [vmem:[%s4] sm:$0xf]
    %v610 = vld [vmem:[%s4 + $0x4] sm:$0xf]
    %v611 = vld [vmem:[%s4 + $0x8] sm:$0xf]
    %v612 = vld [vmem:[%s4 + $0xc] sm:$0xf]
    %v613 = vld [vmem:[%s4 + $0x10] sm:$0xf]
    %v614 = vld [vmem:[%s4 + $0x14] sm:$0xf]
    %v615 = vld [vmem:[%s4 + $0x18] sm:$0xf]
    %v616 = vld [vmem:[%s4 + $0x1c] sm:$0xf]
    %v617 = vld [vmem:[%s4 + $0x20] sm:$0xf]
    %v618 = vld [vmem:[%s4 + $0x24] sm:$0xf]
    %v619 = vld [vmem:[%s4 + $0x28] sm:$0xf]
    %v620 = vld [vmem:[%s4 + $0x2c] sm:$0xf]
    %v621 = vld [vmem:[%s4 + $0x30] sm:$0xf]
    %v622 = vld [vmem:[%s4 + $0x34] sm:$0xf]
    %v623 = vld [vmem:[%s4 + $0x38] sm:$0xf]
    %v624 = vld [vmem:[%s4 + $0x3c] sm:$0xf]
    %v625 = vperm.slane %v35, 2
    %v642 = vunpack.c.l.b16 %v609
    %v643 = vunpack.c.l.b16 %v610
    %v644 = vunpack.c.l.b16 %v611
    %v645 = vunpack.c.l.b16 %v612
    %v646 = vunpack.c.l.b16 %v613
    %v647 = vunpack.c.l.b16 %v614
    %v648 = vunpack.c.l.b16 %v615
    %v649 = vunpack.c.l.b16 %v616
    %v650 = vunpack.c.l.b16 %v617
    %v651 = vunpack.c.l.b16 %v618
    %v652 = vunpack.c.l.b16 %v619
    %v653 = vunpack.c.l.b16 %v620
    %v654 = vunpack.c.l.b16 %v621
    %v655 = vunpack.c.l.b16 %v622
    %v656 = vunpack.c.l.b16 %v623
    %v657 = vunpack.c.l.b16 %v624
    %v658 = vpack.c.b16 %v643, %v642
    %v659 = vpack.c.b16 %v645, %v644
    %v660 = vpack.c.b16 %v647, %v646
    %v661 = vpack.c.b16 %v649, %v648
    %v662 = vpack.c.b16 %v651, %v650
    %v663 = vpack.c.b16 %v653, %v652
    %v664 = vpack.c.b16 %v655, %v654
    %v665 = vpack.c.b16 %v657, %v656
    %674 = vmatpush.bf16.msra.mxu0 %v665
    %675 = vmatpush.bf16.msra.mxu0 %v664
    %676 = vmatpush.bf16.msra.mxu0 %v663
    %677 = vmatpush.bf16.msra.mxu0 %v662
    %678 = vmatpush.bf16.msra.mxu0 %v661
    %679 = vmatpush.bf16.msra.mxu0 %v660
    %680 = vmatpush.bf16.msra.mxu0 %v659
    %681 = vmatpush.bf16.msra.mxu0 %v658
    %682 = vmatmul.bf16.gmra.mxu0 %v607
    %v683 = vpop.f32.mrf.mxu0
    %v684 = vadd.f32 %v625, %v683
    %v685 = vpop.f32.mrf.mxu0
    %v686 = vadd.f32 %v625, %v685
    %687 = vmatmul.bf16.gmra.mxu0 %v608
    %v688 = vpop.f32.mrf.mxu0
    %v689 = vadd.f32 %v625, %v688
    %v690 = vpop.f32.mrf.mxu0
    %v691 = vadd.f32 %v625, %v690
    %692 = vdwg.mxu0
    %v693 = vmax.f32 %v684, 0.0
    %v694 = vmax.f32 %v686, 0.0
    %v695 = vmax.f32 %v689, 0.0
    %v696 = vmax.f32 %v691, 0.0
    %v697 = vpack.c.bf16 %v694, %v693
    %v698 = vpack.c.bf16 %v696, %v695
    %v699 = vld [vmem:[%s5] sm:$0xf]
    %v700 = vld [vmem:[%s5 + $0x4] sm:$0xf]
    %v701 = vld [vmem:[%s5 + $0x8] sm:$0xf]
    %v702 = vld [vmem:[%s5 + $0xc] sm:$0xf]
    %v703 = vld [vmem:[%s5 + $0x10] sm:$0xf]
    %v704 = vld [vmem:[%s5 + $0x14] sm:$0xf]
    %v705 = vld [vmem:[%s5 + $0x18] sm:$0xf]
    %v706 = vld [vmem:[%s5 + $0x1c] sm:$0xf]
    %v707 = vld [vmem:[%s5 + $0x20] sm:$0xf]
    %v708 = vld [vmem:[%s5 + $0x24] sm:$0xf]
    %v709 = vld [vmem:[%s5 + $0x28] sm:$0xf]
    %v710 = vld [vmem:[%s5 + $0x2c] sm:$0xf]
    %v711 = vld [vmem:[%s5 + $0x30] sm:$0xf]
    %v712 = vld [vmem:[%s5 + $0x34] sm:$0xf]
    %v713 = vld [vmem:[%s5 + $0x38] sm:$0xf]
    %v714 = vld [vmem:[%s5 + $0x3c] sm:$0xf]
    %v715 = vperm.slane %v35, 3
    %v732 = vunpack.c.l.b16 %v699
    %v733 = vunpack.c.l.b16 %v700
    %v734 = vunpack.c.l.b16 %v701
    %v735 = vunpack.c.l.b16 %v702
    %v736 = vunpack.c.l.b16 %v703
    %v737 = vunpack.c.l.b16 %v704
    %v738 = vunpack.c.l.b16 %v705
    %v739 = vunpack.c.l.b16 %v706
    %v740 = vunpack.c.l.b16 %v707
    %v741 = vunpack.c.l.b16 %v708
    %v742 = vunpack.c.l.b16 %v709
    %v743 = vunpack.c.l.b16 %v710
    %v744 = vunpack.c.l.b16 %v711
    %v745 = vunpack.c.l.b16 %v712
    %v746 = vunpack.c.l.b16 %v713
    %v747 = vunpack.c.l.b16 %v714
    %v748 = vpack.c.b16 %v733, %v732
    %v749 = vpack.c.b16 %v735, %v734
    %v750 = vpack.c.b16 %v737, %v736
    %v751 = vpack.c.b16 %v739, %v738
    %v752 = vpack.c.b16 %v741, %v740
    %v753 = vpack.c.b16 %v743, %v742
    %v754 = vpack.c.b16 %v745, %v744
    %v755 = vpack.c.b16 %v747, %v746
    %764 = vmatpush.bf16.msra.mxu0 %v755
    %765 = vmatpush.bf16.msra.mxu0 %v754
    %766 = vmatpush.bf16.msra.mxu0 %v753
    %767 = vmatpush.bf16.msra.mxu0 %v752
    %768 = vmatpush.bf16.msra.mxu0 %v751
    %769 = vmatpush.bf16.msra.mxu0 %v750
    %770 = vmatpush.bf16.msra.mxu0 %v749
    %771 = vmatpush.bf16.msra.mxu0 %v748
    %772 = vmatmul.bf16.gmra.mxu0 %v697
    %v773 = vpop.f32.mrf.mxu0
    %v774 = vadd.f32 %v715, %v773
    %v775 = vpop.f32.mrf.mxu0
    %v776 = vadd.f32 %v715, %v775
    %777 = vmatmul.bf16.gmra.mxu0 %v698
    %v778 = vpop.f32.mrf.mxu0
    %v779 = vadd.f32 %v715, %v778
    %v780 = vpop.f32.mrf.mxu0
    %v781 = vadd.f32 %v715, %v780
    %782 = vdwg.mxu0
    %v783 = vadd.f32 %v603, %v774
    %v784 = vadd.f32 %v604, %v776
    %v785 = vadd.f32 %v605, %v779
    %v786 = vadd.f32 %v606, %v781
    %787 = vadd.xlane.f32.xlu0 %v783
    %v788 = vpop.xlane.xlu0 %787
    %789 = vadd.xlane.f32.xlu0 %v784
    %v790 = vpop.xlane.xlu0 %789
    %791 = vadd.xlane.f32.xlu0 %v785
    %v792 = vpop.xlane.xlu0 %791
    %793 = vadd.xlane.f32.xlu0 %v786
    %v794 = vpop.xlane.xlu0 %793
    %v795 = vmul.f32 %v788, 0.03125
    %v796 = vmul.f32 %v790, 0.03125
    %v797 = vmul.f32 %v792, 0.03125
    %v798 = vmul.f32 %v794, 0.03125
    %v799 = vmul.f32 %v783, %v783
    %v800 = vmul.f32 %v784, %v784
    %v801 = vmul.f32 %v785, %v785
    %v802 = vmul.f32 %v786, %v786
    %803 = vadd.xlane.f32.xlu0 %v799
    %v804 = vpop.xlane.xlu0 %803
    %805 = vadd.xlane.f32.xlu0 %v800
    %v806 = vpop.xlane.xlu0 %805
    %807 = vadd.xlane.f32.xlu0 %v801
    %v808 = vpop.xlane.xlu0 %807
    %809 = vadd.xlane.f32.xlu0 %v802
    %v810 = vpop.xlane.xlu0 %809
    %v811 = vmul.f32 %v804, 0.03125
    %v812 = vmul.f32 %v806, 0.03125
    %v813 = vmul.f32 %v808, 0.03125
    %v814 = vmul.f32 %v810, 0.03125
    %v815 = vmul.f32 %v795, %v795
    %v816 = vmul.f32 %v796, %v796
    %v817 = vmul.f32 %v797, %v797
    %v818 = vmul.f32 %v798, %v798
    %v819 = vsub.f32 %v811, %v815
    %v820 = vsub.f32 %v812, %v816
    %v821 = vsub.f32 %v813, %v817
    %v822 = vsub.f32 %v814, %v818
    %v823 = vsub.f32 %v783, %v795
    %v824 = vsub.f32 %v784, %v796
    %v825 = vsub.f32 %v785, %v797
    %v826 = vsub.f32 %v786, %v798
    %v827 = vadd.f32 %v819, 1e-05
    %v828 = vadd.f32 %v820, 1e-05
    %v829 = vadd.f32 %v821, 1e-05
    %v830 = vadd.f32 %v822, 1e-05
    %v831 = vrsqrt.pop %v827
    %v832 = vmul.f32 %v831, %v827
    %v833 = vmul.f32 %v832, %v831
    %v834 = vmul.f32 0.5, %v833
    %v835 = vsub.f32 1.5, %v834
    %v836 = vmul.f32 %v831, %v835
    %vm837 = vweird.f32 %v827
    %vm838 = vweird.f32 %v831
    %vm839 = vmor %vm837, %vm838
    %v840 = vsel %vm839, %v831, %v836
    %v841 = vrsqrt.pop %v828
    %v842 = vmul.f32 %v841, %v828
    %v843 = vmul.f32 %v842, %v841
    %v844 = vmul.f32 0.5, %v843
    %v845 = vsub.f32 1.5, %v844
    %v846 = vmul.f32 %v841, %v845
    %vm847 = vweird.f32 %v828
    %vm848 = vweird.f32 %v841
    %vm849 = vmor %vm847, %vm848
    %v850 = vsel %vm849, %v841, %v846
    %v851 = vrsqrt.pop %v829
    %v852 = vmul.f32 %v851, %v829
    %v853 = vmul.f32 %v852, %v851
    %v854 = vmul.f32 0.5, %v853
    %v855 = vsub.f32 1.5, %v854
    %v856 = vmul.f32 %v851, %v855
    %vm857 = vweird.f32 %v829
    %vm858 = vweird.f32 %v851
    %vm859 = vmor %vm857, %vm858
    %v860 = vsel %vm859, %v851, %v856
    %v861 = vrsqrt.pop %v830
    %v862 = vmul.f32 %v861, %v830
    %v863 = vmul.f32 %v862, %v861
    %v864 = vmul.f32 0.5, %v863
    %v865 = vsub.f32 1.5, %v864
    %v866 = vmul.f32 %v861, %v865
    %vm867 = vweird.f32 %v830
    %vm868 = vweird.f32 %v861
    %vm869 = vmor %vm867, %vm868
    %v870 = vsel %vm869, %v861, %v866
    %v871 = vmul.f32 %v823, %v840
    %v872 = vmul.f32 %v824, %v850
    %v873 = vmul.f32 %v825, %v860
    %v874 = vmul.f32 %v826, %v870
    %v875 = vperm.slane %v35, 4
    %v876 = vmul.f32 %v871, %v875
    %v877 = vmul.f32 %v872, %v875
    %v878 = vmul.f32 %v873, %v875
    %v879 = vmul.f32 %v874, %v875
    %v880 = vperm.slane %v35, 5
    %v881 = vadd.f32 %v876, %v880
    %v882 = vadd.f32 %v877, %v880
    %v883 = vadd.f32 %v878, %v880
    %v884 = vadd.f32 %v879, %v880
    %v885 = vpack.c.bf16 %v882, %v881
    %v886 = vpack.c.bf16 %v884, %v883
    %v887 = vld [vmem:[%s6] sm:$0xf]
    %v888 = vld [vmem:[%s6 + $0x4] sm:$0xf]
    %v889 = vld [vmem:[%s6 + $0x8] sm:$0xf]
    %v890 = vld [vmem:[%s6 + $0xc] sm:$0xf]
    %v891 = vld [vmem:[%s6 + $0x10] sm:$0xf]
    %v892 = vld [vmem:[%s6 + $0x14] sm:$0xf]
    %v893 = vld [vmem:[%s6 + $0x18] sm:$0xf]
    %v894 = vld [vmem:[%s6 + $0x1c] sm:$0xf]
    %v895 = vld [vmem:[%s6 + $0x20] sm:$0xf]
    %v896 = vld [vmem:[%s6 + $0x24] sm:$0xf]
    %v897 = vld [vmem:[%s6 + $0x28] sm:$0xf]
    %v898 = vld [vmem:[%s6 + $0x2c] sm:$0xf]
    %v899 = vld [vmem:[%s6 + $0x30] sm:$0xf]
    %v900 = vld [vmem:[%s6 + $0x34] sm:$0xf]
    %v901 = vld [vmem:[%s6 + $0x38] sm:$0xf]
    %v902 = vld [vmem:[%s6 + $0x3c] sm:$0xf]
    %v903 = vperm.slane %v35, 6
    %v920 = vunpack.c.l.b16 %v887
    %v921 = vunpack.c.l.b16 %v888
    %v922 = vunpack.c.l.b16 %v889
    %v923 = vunpack.c.l.b16 %v890
    %v924 = vunpack.c.l.b16 %v891
    %v925 = vunpack.c.l.b16 %v892
    %v926 = vunpack.c.l.b16 %v893
    %v927 = vunpack.c.l.b16 %v894
    %v928 = vunpack.c.l.b16 %v895
    %v929 = vunpack.c.l.b16 %v896
    %v930 = vunpack.c.l.b16 %v897
    %v931 = vunpack.c.l.b16 %v898
    %v932 = vunpack.c.l.b16 %v899
    %v933 = vunpack.c.l.b16 %v900
    %v934 = vunpack.c.l.b16 %v901
    %v935 = vunpack.c.l.b16 %v902
    %v936 = vpack.c.b16 %v921, %v920
    %v937 = vpack.c.b16 %v923, %v922
    %v938 = vpack.c.b16 %v925, %v924
    %v939 = vpack.c.b16 %v927, %v926
    %v940 = vpack.c.b16 %v929, %v928
    %v941 = vpack.c.b16 %v931, %v930
    %v942 = vpack.c.b16 %v933, %v932
    %v943 = vpack.c.b16 %v935, %v934
    %952 = vmatpush.bf16.msra.mxu0 %v943
    %953 = vmatpush.bf16.msra.mxu0 %v942
    %954 = vmatpush.bf16.msra.mxu0 %v941
    %955 = vmatpush.bf16.msra.mxu0 %v940
    %956 = vmatpush.bf16.msra.mxu0 %v939
    %957 = vmatpush.bf16.msra.mxu0 %v938
    %958 = vmatpush.bf16.msra.mxu0 %v937
    %959 = vmatpush.bf16.msra.mxu0 %v936
    %960 = vmatmul.bf16.gmra.mxu0 %v885
    %v961 = vpop.f32.mrf.mxu0
    %v962 = vadd.f32 %v903, %v961
    %v963 = vpop.f32.mrf.mxu0
    %v964 = vadd.f32 %v903, %v963
    %965 = vmatmul.bf16.gmra.mxu0 %v886
    %v966 = vpop.f32.mrf.mxu0
    %v967 = vadd.f32 %v903, %v966
    %v968 = vpop.f32.mrf.mxu0
    %v969 = vadd.f32 %v903, %v968
    %970 = vdwg.mxu0
    %v971 = vld [vmem:[%s1] sm:$0xff]
    %v972 = vld [vmem:[%s1 + $0x8] sm:$0xff]
    %v973 = vld [vmem:[%s1 + $0x10] sm:$0xff]
    %v974 = vld [vmem:[%s1 + $0x18] sm:$0xff]
    %975 = vmax.xlane.f32.xlu0 %v962
    %v976 = vpop.xlane.xlu0 %975
    %977 = vmax.xlane.f32.xlu0 %v964
    %v978 = vpop.xlane.xlu0 %977
    %979 = vmax.xlane.f32.xlu0 %v967
    %v980 = vpop.xlane.xlu0 %979
    %981 = vmax.xlane.f32.xlu0 %v969
    %v982 = vpop.xlane.xlu0 %981
    %v983 = vsub.f32 %v962, %v976
    %v984 = vsub.f32 %v964, %v978
    %v985 = vsub.f32 %v967, %v980
    %v986 = vsub.f32 %v969, %v982
    %v987 = vmul.f32 %v983, 1.442695
    %v988 = vpow.pop %v987
    %v989 = vmul.f32 %v984, 1.442695
    %v990 = vpow.pop %v989
    %v991 = vmul.f32 %v985, 1.442695
    %v992 = vpow.pop %v991
    %v993 = vmul.f32 %v986, 1.442695
    %v994 = vpow.pop %v993
    %995 = vadd.xlane.f32.xlu0 %v988
    %v996 = vpop.xlane.xlu0 %995
    %997 = vadd.xlane.f32.xlu0 %v990
    %v998 = vpop.xlane.xlu0 %997
    %999 = vadd.xlane.f32.xlu0 %v992
    %v1000 = vpop.xlane.xlu0 %999
    %1001 = vadd.xlane.f32.xlu0 %v994
    %v1002 = vpop.xlane.xlu0 %1001
    %v1003 = vlog2.pop %v996
    %v1004 = vmul.f32 %v1003, 0.6931472
    %v1005 = vlog2.pop %v998
    %v1006 = vmul.f32 %v1005, 0.6931472
    %v1007 = vlog2.pop %v1000
    %v1008 = vmul.f32 %v1007, 0.6931472
    %v1009 = vlog2.pop %v1002
    %v1010 = vmul.f32 %v1009, 0.6931472
    %v1011 = vadd.f32 %v1004, %v976
    %v1012 = vadd.f32 %v1006, %v978
    %v1013 = vadd.f32 %v1008, %v980
    %v1014 = vadd.f32 %v1010, %v982
    %v1015 = vlaneseq
    %v1016 = vand.u32 %v1015, 127
    %1017 = vset.pattern.permute.xlu0 0
    %1018 = vperm.xlu0 %1017, %v971
    %v1019 = vpop.permute.xlu0 %1018
    %1020 = vset.pattern.permute.xlu0 0
    %1021 = vperm.xlu0 %1020, %v972
    %v1022 = vpop.permute.xlu0 %1021
    %1023 = vset.pattern.permute.xlu0 0
    %1024 = vperm.xlu0 %1023, %v973
    %v1025 = vpop.permute.xlu0 %1024
    %1026 = vset.pattern.permute.xlu0 0
    %1027 = vperm.xlu0 %1026, %v974
    %v1028 = vpop.permute.xlu0 %1027
    %vm1029 = vcmp.eq.s32.totalorder %v1016, %v1019
    %vm1030 = vcmp.eq.s32.totalorder %v1016, %v1022
    %vm1031 = vcmp.eq.s32.totalorder %v1016, %v1025
    %vm1032 = vcmp.eq.s32.totalorder %v1016, %v1028
    %v1033 = vsel %vm1029, 1, 0
    %v1034 = vsel %vm1030, 1, 0
    %v1035 = vsel %vm1031, 1, 0
    %v1036 = vsel %vm1032, 1, 0
    %v1037 = vcvt.s32.f32 %v1033
    %v1038 = vcvt.s32.f32 %v1034
    %v1039 = vcvt.s32.f32 %v1035
    %v1040 = vcvt.s32.f32 %v1036
    %v1041 = vmul.f32 %v962, %v1037
    %v1042 = vmul.f32 %v964, %v1038
    %v1043 = vmul.f32 %v967, %v1039
    %v1044 = vmul.f32 %v969, %v1040
    %1045 = vadd.xlane.f32.xlu0 %v1041
    %v1046 = vpop.xlane.xlu0 %1045
    %1047 = vadd.xlane.f32.xlu0 %v1042
    %v1048 = vpop.xlane.xlu0 %1047
    %1049 = vadd.xlane.f32.xlu0 %v1043
    %v1050 = vpop.xlane.xlu0 %1049
    %1051 = vadd.xlane.f32.xlu0 %v1044
    %v1052 = vpop.xlane.xlu0 %1051
    %v1053 = vsub.f32 %v1011, %v1046
    %v1054 = vsub.f32 %v1012, %v1048
    %v1055 = vsub.f32 %v1013, %v1050
    %v1056 = vsub.f32 %v1014, %v1052
    %vm1057 = vcmp.ne.s32.totalorder %v971, 0
    %vm1058 = vcmp.ne.s32.totalorder %v972, 0
    %vm1059 = vcmp.ne.s32.totalorder %v973, 0
    %vm1060 = vcmp.ne.s32.totalorder %v974, 0
    %v1061 = vsel %vm1057, 1, 0
    %v1062 = vsel %vm1058, 1, 0
    %v1063 = vsel %vm1059, 1, 0
    %v1064 = vsel %vm1060, 1, 0
    %v1065 = vcvt.s32.f32 %v1061
    %v1066 = vcvt.s32.f32 %v1062
    %v1067 = vcvt.s32.f32 %v1063
    %v1068 = vcvt.s32.f32 %v1064
    %v1069 = vmul.f32 %v1053, %v1065
    %v1070 = vmul.f32 %v1054, %v1066
    %v1071 = vmul.f32 %v1055, %v1067
    %v1072 = vmul.f32 %v1056, %v1068
    %vm1073 = vcmask 7168
    %v1074 = vsel %vm1073, %v1069, 0.0
    %v1075 = vsel %vm1073, %v1070, 0.0
    %v1076 = vadd.f32 %v1074, %v1075
    %v1077 = vsel %vm1073, %v1071, 0.0
    %v1078 = vadd.f32 %v1076, %v1077
    %v1079 = vsel %vm1073, %v1072, 0.0
    %v1080 = vadd.f32 %v1078, %v1079
    %1081 = vadd.xlane.f32.xlu0 %v1080
    %v1082 = vpop.xlane.xlu0 %1081
    %v1083 = vrot.slane %v1082, 4
    %v1084 = vadd.f32 %v1082, %v1083
    %v1085 = vrot.slane %v1084, 2
    %v1086 = vadd.f32 %v1084, %v1085
    %v1087 = vrot.slane %v1086, 1
    %v1088 = vadd.f32 %v1086, %v1087
    %s1089 = vtos %v1088
    %v1090 = vsel %vm1073, %v1065, 0.0
    %v1091 = vsel %vm1073, %v1066, 0.0
    %v1092 = vadd.f32 %v1090, %v1091
    %v1093 = vsel %vm1073, %v1067, 0.0
    %v1094 = vadd.f32 %v1092, %v1093
    %v1095 = vsel %vm1073, %v1068, 0.0
    %v1096 = vadd.f32 %v1094, %v1095
    %1097 = vadd.xlane.f32.xlu0 %v1096
    %v1098 = vpop.xlane.xlu0 %1097
    %v1099 = vrot.slane %v1098, 4
    %v1100 = vadd.f32 %v1098, %v1099
    %v1101 = vrot.slane %v1100, 2
    %v1102 = vadd.f32 %v1100, %v1101
    %v1103 = vrot.slane %v1102, 1
    %v1104 = vadd.f32 %v1102, %v1103
    %s1105 = vtos %v1104
    %s1106 = smax.f32 %s1105, 1.0
    %v1107 = vstv %s1106
    %v1108 = vrcp.pop %v1107
    %v1109 = vmul.f32 %v1107, %v1108
    %v1110 = vsub.f32 1.0, %v1109
    %v1111 = vmul.f32 %v1108, %v1110
    %v1112 = vadd.f32 %v1108, %v1111
    %vm1113 = vweird.f32 %v1107
    %vm1114 = vweird.f32 %v1108
    %vm1115 = vmor %vm1113, %vm1114
    %v1116 = vsel %vm1115, %v1108, %v1112
    %v1117 = vand.u32 2147483647, %v1107
    %vm1118 = vcmp.eq.f32.partialorder %v1117, 8.507059e+37
    %v1119 = vand.u32 %v1107, 2147483648
    %v1120 = vor.u32 1.1754944e-38, %v1119
    %v1121 = vsel %vm1118, %v1120, %v1116
    %s1122 = vtos %v1121
    %s1123 = smul.f32 %s1089, %s1122
    %s1124 = scalar_lea.smem [#allocation2], 0
    %1125 = sst [smem:[%s1124]] %s1123
    // Predicated region
    $region34: #{bert_mlm_forward.1} parent=1 // pred_check
      _
    $region35: #{bert_mlm_forward.1} parent=1 // pred_check_branch
      %1127 = sbr.rel (0) target = $region37
    $region36: #{bert_mlm_forward.1} parent=1 // pred_region
      %1129 = vsyncadd [#allocation3], 0
      %s1131 = sshll.u32 %s8, 4
      %s1132 = int_to_ptr.hbm [resolvable:$true] %s1131
      %1134 = dma.smem_to_hbm [#allocation2], 16, %s1132, [#allocation3]
    $region37: #{bert_mlm_forward.1} parent=1 // pred_fallthru
      _
    // Predicated region
    $region38: #{bert_mlm_forward.1} parent=1 // pred_check
      _
    $region39: #{bert_mlm_forward.1} parent=1 // pred_check_branch
      %1136 = sbr.rel (0) target = $region41
    $region40: #{bert_mlm_forward.1} parent=1 // pred_region
      %1138 = dma.done [#allocation3], 16
    $region41: #{bert_mlm_forward.1} parent=1 // pred_fallthru
      _
    %1139 = sfence
    %1140 = vsyncpa [#allocation3], 1

</llo_original>
